<compile_context>
chip_gen: v7x
topology: tpu7x:2x2x1
jax: 0.10.0
libtpu: 0.0.40
codegen_flags: <defaults>
</compile_context>

<pallas_src>
import jax
import jax.numpy as jnp
from jax.experimental import pallas as pl
from jax.experimental.pallas import tpu as pltpu

VOCAB = 3  # len(allowable_features['node_type'])


def _node_encoder_kernel(x_ref, emb_ref, out_ref):
    # x_ref:   (tile, 2)      col 0 = node type (as float), col 1 = scalar feature
    # emb_ref: (3, out_w)     embedding table padded with a zero final column
    # out_ref: (tile, out_w)  out_w = emb_dim + 1
    tile, out_w = out_ref.shape

    x = x_ref[...]                               # (tile, 2)
    idx = x[:, 0:1].astype(jnp.int32)            # (tile, 1)
    feat = x[:, 1:2]                             # (tile, 1)

    # Gather via VPU selects over the 3 broadcast table rows.
    # NOTE: node types outside {0, 1, 2} fall through to row 2 (inputs are
    # guaranteed in-range by the spec; torch.nn.Embedding would raise).
    e0 = emb_ref[0:1, :]                         # (1, out_w)
    e1 = emb_ref[1:2, :]
    e2 = emb_ref[2:3, :]
    emb = jnp.where(idx == 0, e0, jnp.where(idx == 1, e1, e2))   # (tile, out_w)

    # Merge the scalar feature into the last column and emit one full store.
    col = jax.lax.broadcasted_iota(jnp.int32, (tile, out_w), 1)
    out_ref[...] = jnp.where(col == out_w - 1, feat, emb).astype(out_ref.dtype)


def node_encoder(x, emb_weight, *, tile_n=2048):
    """x: (N, 2) float ; emb_weight: (3, emb_dim) float32 -> (N, emb_dim + 1)."""
    n = x.shape[0]
    vocab, emb_dim = emb_weight.shape
    assert vocab == VOCAB, "kernel is specialized for a 3-entry node-type table"
    out_w = emb_dim + 1

    x = x.astype(jnp.float32)
    # Pad the table with a zero final column so the kernel writes a single
    # (tile, emb_dim + 1) block (the feature overwrites that column).
    emb_pad = jnp.pad(emb_weight.astype(jnp.float32), ((0, 0), (0, 1)))

    # Pad N so every row-tile is full and (8, *)-aligned; slice result at the end.
    n_pad = ((n + 7) // 8) * 8
    tile = min(tile_n, n_pad)
    n_pad = ((n_pad + tile - 1) // tile) * tile
    if n_pad != n:
        x = jnp.pad(x, ((0, n_pad - n), (0, 0)))

    grid = (n_pad // tile,)

    out = pl.pallas_call(
        _node_encoder_kernel,
        out_shape=jax.ShapeDtypeStruct((n_pad, out_w), jnp.float32),
        grid_spec=pl.GridSpec(
            grid=grid,
            in_specs=[
                pl.BlockSpec((tile, 2), lambda i: (i, 0)),
                # Constant index_map -> table stays resident in VMEM across steps.
                pl.BlockSpec((vocab, out_w), lambda i: (0, 0)),
            ],
            out_specs=pl.BlockSpec((tile, out_w), lambda i: (i, 0)),
        ),
        compiler_params=pltpu.CompilerParams(
            dimension_semantics=("parallel",)),
        cost_estimate=pl.CostEstimate(
            flops=2 * n_pad * out_w,
            transcendentals=0,
            bytes_accessed=4 * (n_pad * 2 + vocab * out_w + n_pad * out_w)),
    )(x, emb_pad)

    return out[:n] if n_pad != n else out


def xavier_uniform(key, shape, dtype=jnp.float32):
    fan_in, fan_out = shape[0], shape[1]
    bound = (6.0 / (fan_in + fan_out)) ** 0.5
    return jax.random.uniform(key, shape, dtype, minval=-bound, maxval=bound)


if __name__ == "__main__":
    key = jax.random.PRNGKey(0)
    k_emb, k_idx, k_feat = jax.random.split(key, 3)

    N = 8
    EMB_DIM = 32

    # Deterministic parameter init (matches torch.nn.init.xavier_uniform_ shape/scale).
    emb_weight = xavier_uniform(k_emb, (VOCAB, EMB_DIM))

    # Build input x: (N, 2); column 0 = node type in {0,1,2}, column 1 = float feature.
    node_type = jax.random.randint(k_idx, (N,), 0, VOCAB).astype(jnp.float32)
    feat = jax.random.normal(k_feat, (N,), jnp.float32)
    x = jnp.stack([node_type, feat], axis=1)  # (N, 2)

    # jit fuses the wrapper-side cast/pad glue with the pallas_call.
    out = jax.jit(node_encoder)(x, emb_weight)
    out = jax.block_until_ready(out)

    # Pure-JAX reference check.
    ref = jnp.concatenate(
        [emb_weight[x[:, 0].astype(jnp.int32)], x[:, 1].reshape(-1, 1)], axis=1)
    assert out.shape == (N, EMB_DIM + 1), out.shape
    assert jnp.allclose(out, ref, atol=1e-6), "mismatch vs reference"

    print("KERNEL_OK")
</pallas_src>

<mosaic_0001>
module attributes {stable_mosaic.version = 11 : i64} {
  func.func @_node_encoder_kernel(%arg0: i32, %arg1: memref<8x2xf32, #tpu.memory_space<vmem>>, %arg2: memref<3x33xf32, #tpu.memory_space<vmem>>, %arg3: memref<8x33xf32, #tpu.memory_space<vmem>>) attributes {dimension_semantics = [#tpu.dimension_semantics<parallel>], iteration_bounds = array<i64: 1>, scalar_prefetch = 0 : i64, scratch_operands = 0 : i64, tpu.core_type = #tpu.core_type<tc>, window_params = [{transform_indices = @transform_0, window_bounds = array<i64: 8, 2>}, {pipeline_mode = #tpu.pipeline_mode<synchronous>, transform_indices = @transform_1, window_bounds = array<i64: 3, 33>}, {transform_indices = @transform_2, window_bounds = array<i64: 8, 33>}]} {
    %c0 = arith.constant 0 : index
    %c0_0 = arith.constant 0 : index
    %0 = vector.load %arg1[%c0, %c0_0] : memref<8x2xf32, #tpu.memory_space<vmem>>, vector<8x2xf32>
    %1 = vector.extract_strided_slice %0 {offsets = [0, 0], sizes = [8, 1], strides = [1, 1]} : vector<8x2xf32> to vector<8x1xf32>
    %2 = arith.fptosi %1 : vector<8x1xf32> to vector<8x1xi32>
    %3 = vector.extract_strided_slice %0 {offsets = [0, 1], sizes = [8, 1], strides = [1, 1]} : vector<8x2xf32> to vector<8x1xf32>
    %c0_1 = arith.constant 0 : index
    %c0_2 = arith.constant 0 : index
    %4 = vector.load %arg2[%c0_1, %c0_2] : memref<3x33xf32, #tpu.memory_space<vmem>>, vector<1x33xf32>
    %c1 = arith.constant 1 : index
    %c0_3 = arith.constant 0 : index
    %5 = vector.load %arg2[%c1, %c0_3] : memref<3x33xf32, #tpu.memory_space<vmem>>, vector<1x33xf32>
    %c2 = arith.constant 2 : index
    %c0_4 = arith.constant 0 : index
    %6 = vector.load %arg2[%c2, %c0_4] : memref<3x33xf32, #tpu.memory_space<vmem>>, vector<1x33xf32>
    %c0_i32 = arith.constant 0 : i32
    %7 = vector.broadcast %c0_i32 : i32 to vector<8x1xi32>
    %8 = arith.cmpi eq, %2, %7 : vector<8x1xi32>
    %c1_i32 = arith.constant 1 : i32
    %9 = vector.broadcast %c1_i32 : i32 to vector<8x1xi32>
    %10 = arith.cmpi eq, %2, %9 : vector<8x1xi32>
    %11 = vector.shape_cast %10 : vector<8x1xi1> to vector<8x1xi1>
    %12 = vector.broadcast %11 : vector<8x1xi1> to vector<8x33xi1>
    %13 = vector.shape_cast %5 : vector<1x33xf32> to vector<1x33xf32>
    %14 = vector.broadcast %13 : vector<1x33xf32> to vector<8x33xf32>
    %15 = vector.shape_cast %6 : vector<1x33xf32> to vector<1x33xf32>
    %16 = vector.broadcast %15 : vector<1x33xf32> to vector<8x33xf32>
    %17 = arith.select %12, %14, %16 : vector<8x33xi1>, vector<8x33xf32>
    %18 = vector.shape_cast %8 : vector<8x1xi1> to vector<8x1xi1>
    %19 = vector.broadcast %18 : vector<8x1xi1> to vector<8x33xi1>
    %20 = vector.shape_cast %4 : vector<1x33xf32> to vector<1x33xf32>
    %21 = vector.broadcast %20 : vector<1x33xf32> to vector<8x33xf32>
    %22 = arith.select %19, %21, %17 : vector<8x33xi1>, vector<8x33xf32>
    %23 = tpu.iota {dimensions = array<i32: 1>} : vector<8x33xi32>
    %c32_i32 = arith.constant 32 : i32
    %24 = vector.broadcast %c32_i32 : i32 to vector<8x33xi32>
    %25 = arith.cmpi eq, %23, %24 : vector<8x33xi32>
    %26 = vector.shape_cast %3 : vector<8x1xf32> to vector<8x1xf32>
    %27 = vector.broadcast %26 : vector<8x1xf32> to vector<8x33xf32>
    %28 = arith.select %25, %27, %22 : vector<8x33xi1>, vector<8x33xf32>
    %c0_5 = arith.constant 0 : index
    %c0_6 = arith.constant 0 : index
    %29 = vector.load %arg3[%c0_5, %c0_6] : memref<8x33xf32, #tpu.memory_space<vmem>>, vector<8x33xf32>
    tpu.vector_store %arg3[%c0_5, %c0_6], %28 {strides = array<i32>} : memref<8x33xf32, #tpu.memory_space<vmem>>, vector<8x33xf32>,
    return
  }
  func.func @transform_0(%arg0: i32) -> (i32, i32) {
    %c0_i32 = arith.constant 0 : i32
    %c0_i32_0 = arith.constant 0 : i32
    return %arg0, %c0_i32 : i32, i32
  }
  func.func @transform_1(%arg0: i32) -> (i32, i32) {
    %c0_i32 = arith.constant 0 : i32
    %c0_i32_0 = arith.constant 0 : i32
    %c0_i32_1 = arith.constant 0 : i32
    return %c0_i32, %c0_i32_0 : i32, i32
  }
  func.func @transform_2(%arg0: i32) -> (i32, i32) {
    %c0_i32 = arith.constant 0 : i32
    %c0_i32_0 = arith.constant 0 : i32
    return %arg0, %c0_i32 : i32, i32
  }
}

</mosaic_0001>

<llo_original>
// kernel: node_encoder.1
$region0: #{node_encoder.1}
  #allocation0 [shape = 'u32[]', space=smem, size = 0x4, offset = 0x4, fixed_abs, tag = 'smem constant byte address 0x4 - core index']
  #allocation1 [shape = 'u32[144,128]{1,0:T(1,128)}', space=vmem, size = 0x12000, scoped, tag = 'internal scratch']
  %s0 = inlined_call_operand.vmem [shape: f32[8,2], index: 0, kind: input, shape index: {}]
  %s1 = inlined_call_operand.vmem [shape: f32[3,33], index: 1, kind: input, shape index: {}]
  %s2 = inlined_call_operand.hbm [shape: f32[8,33], index: 2, kind: output, shape index: {}]
  %s3 = sld [smem:[#allocation0]]
  $region18: #{node_encoder.1} parent=0
    _
  %s5 = ssub.s32 1, %s3
  %s6 = scalar_select 0, %s5, %s3
  $region1: #{node_encoder.1} parent=0
    #allocation2 [shape = 'u8[4096]{0}', space=vmem, size = 0x1000, scoped, tag = 'output window, operand 0, single buffered']
    #allocation3 [shape = 's32[1]{0}', space=sflag, size = 0x4, scoped, tag = 'scoped memory for node_encoder.1']
    %7 = vsyncpa [#allocation3], 0
    // Predicated region
    $region2: #{node_encoder.1} parent=1 // pred_check
      _
    $region3: #{node_encoder.1} parent=1 // pred_check_branch
      %9 = sbr.rel (0) target = $region5
    $region4: #{node_encoder.1} parent=1 // pred_region
      _
    $region5: #{node_encoder.1} parent=1 // pred_fallthru
      _
    // Predicated region
    $region6: #{node_encoder.1} parent=1 // pred_check
      _
    $region7: #{node_encoder.1} parent=1 // pred_check_branch
      %11 = sbr.rel (0) target = $region9
    $region8: #{node_encoder.1} parent=1 // pred_region
      _
    $region9: #{node_encoder.1} parent=1 // pred_fallthru
      _
    %v12 = vld [vmem:[%s0] sm:$0xff]
    %v13 = vcvt.f32.s32.to.zero.pseudo %v12
    %v14 = vld [vmem:[%s1] sm:$0x1]
    %v15 = vld [vmem:[%s1 + $0x1] sm:$0x1]
    %v16 = vld [vmem:[%s1 + $0x2] sm:$0x1]
    %vm17 = vcmp.eq.s32.totalorder %v13, 0
    %vm18 = vcmp.eq.s32.totalorder %v13, 1
    %v19 = vsel %vm18, 1, 0
    %20 = vset.pattern.permute.xlu0 0
    %21 = vperm.xlu0 %20, %v19
    %v22 = vpop.permute.xlu0 %21
    %vm23 = vcmp.eq.s32.totalorder %v22, 1
    %v24 = vlaneseq
    %v25 = vshrl.u32 %v24, 7
    %v26 = vsub.s32 0, %v25
    %v27 = vrot.slane %v15, %v26
    %v28 = vlaneseq
    %v29 = vshrl.u32 %v28, 7
    %v30 = vsub.s32 0, %v29
    %v31 = vrot.slane %v16, %v30
    %v32 = vsel %vm23, %v27, %v31
    %v33 = vsel %vm17, 1, 0
    %34 = vset.pattern.permute.xlu0 0
    %35 = vperm.xlu0 %34, %v33
    %v36 = vpop.permute.xlu0 %35
    %vm37 = vcmp.eq.s32.totalorder %v36, 1
    %v38 = vlaneseq
    %v39 = vshrl.u32 %v38, 7
    %v40 = vsub.s32 0, %v39
    %v41 = vrot.slane %v14, %v40
    %v42 = vsel %vm37, %v41, %v32
    %v43 = vlaneseq
    %v44 = vand.u32 %v43, 127
    %vm45 = vcmp.eq.s32.totalorder %v44, 32
    %47 = vset.pattern.permute.xlu0 1
    %48 = vperm.xlu0 %47, %v12
    %v49 = vpop.permute.xlu0 %48
    %v51 = vsel %vm45, %v49, %v42
    %vm52 = vcmask 269312
    %53 = vst.msk [vmem:[#allocation2] sm:$0xff] %vm52, %v51
    // Predicated region
    $region10: #{node_encoder.1} parent=1 // pred_check
      _
    $region11: #{node_encoder.1} parent=1 // pred_check_branch
      %55 = sbr.rel (0) target = $region13
    $region12: #{node_encoder.1} parent=1 // pred_region
      %s57 = ssub.s32 128, 128
      %58 = vsyncadd [#allocation3], %s57
      %s60 = sshll.u32 [#allocation2], 4
      %s61 = int_to_ptr.vmem [resolvable:$true] %s60
      %63 = dma.vmem_to_hbm [thread:$0]  %s61, 128, %s2, [#allocation3]
    $region13: #{node_encoder.1} parent=1 // pred_fallthru
      _
    // Predicated region
    $region14: #{node_encoder.1} parent=1 // pred_check
      _
    $region15: #{node_encoder.1} parent=1 // pred_check_branch
      %65 = sbr.rel (0) target = $region17
    $region16: #{node_encoder.1} parent=1 // pred_region
      %66 = dma.done [#allocation3], 128
    $region17: #{node_encoder.1} parent=1 // pred_fallthru
      _
    %67 = vsyncpa [#allocation3], 1

</llo_original>
